<compile_context>
chip_gen: v7x
topology: tpu7x:2x2x1
jax: 0.10.0
libtpu: 0.0.40
codegen_flags: <defaults>
</compile_context>

<pallas_src>
import functools

import numpy as np
import jax
import jax.numpy as jnp
from jax import lax
from jax.experimental import pallas as pl
from jax.experimental.pallas import tpu as pltpu

_LANE = 128


def _cdiv(a, b):
    return -(-a // b)


def _budgets(force_block_bytes=None):
    """(per-input block byte budget, vmem_limit_bytes, prefer >=2 batch blocks)."""
    if force_block_bytes is not None:          # testing hook
        return force_block_bytes, 32 * 1024 * 1024, False
    vmem = 0
    try:
        vmem = int(pltpu.get_tpu_info().vmem_capacity_bytes)
    except Exception:
        vmem = 0
    if vmem >= 128 * 1024 * 1024:
        # v5e / v6e: 128 MiB physical VMEM, single TensorCore per chip.
        return 8 * 1024 * 1024, 64 * 1024 * 1024, False
    # v7x (64 MiB VMEM, 2 TCs/chip) or unknown: conservative blocks, and keep
    # >= 2 batch blocks so both TensorCores share the HBM-bound streaming.
    return 4 * 1024 * 1024, 32 * 1024 * 1024, True


# --------------------------------------------------------------------------
# Kernel A: whole (padded) feature extent in one tile (kf == 1).
# Row-chunk loop with register carries; outputs written directly (no scratch,
# no pl.when).
# --------------------------------------------------------------------------
def _reduce_single_kernel(x_ref, y_ref, sq_out, d_out, *,
                          rc, full_strips, tail_valid):
    tb = x_ref.shape[0]
    n_chunks = tb // rc

    def process_chunk(r0):
        zero = jnp.zeros((rc, _LANE), jnp.float32)

        def strip(j, carry):
            sq, ds = carry
            off = pl.multiple_of(j * _LANE, _LANE)
            xs = x_ref[pl.ds(r0, rc), pl.ds(off, _LANE)].astype(jnp.float32)
            ys = y_ref[pl.ds(r0, rc), pl.ds(off, _LANE)].astype(jnp.float32)
            d = xs - ys
            return (sq + d * d, ds + d)

        sq, ds = lax.fori_loop(0, full_strips, strip, (zero, zero),
                               unroll=min(8, max(full_strips, 1)))
        if tail_valid:
            # Ragged feature tail: only this final strip pays the lane mask.
            off = full_strips * _LANE
            xs = x_ref[pl.ds(r0, rc), pl.ds(off, _LANE)].astype(jnp.float32)
            ys = y_ref[pl.ds(r0, rc), pl.ds(off, _LANE)].astype(jnp.float32)
            lane = lax.broadcasted_iota(jnp.int32, (rc, _LANE), 1)
            d = jnp.where(lane < tail_valid, xs - ys, 0.0)
            sq = sq + d * d
            ds = ds + d
        # One cross-lane reduce + narrow store per row chunk (epilogue only).
        sq_out[pl.ds(r0, rc), :] = jnp.sum(sq, axis=1, keepdims=True)
        d_out[pl.ds(r0, rc), :] = jnp.sum(ds, axis=1, keepdims=True)

    if n_chunks == 1:
        process_chunk(0)
    else:
        @pl.loop(0, n_chunks)
        def _(c):
            process_chunk(pl.multiple_of(c * rc, rc))


# --------------------------------------------------------------------------
# Kernel B: feature dim split across kf grid steps (large F). Per-row partials
# accumulate in (tb, 128) f32 VMEM scratch; reduce + store on the last step.
# --------------------------------------------------------------------------
def _reduce_multi_kernel(x_ref, y_ref, sq_out, d_out, sq_acc, d_acc, *,
                         fr, tf, kf):
    f_step = pl.program_id(1)
    tb = x_ref.shape[0]
    nstrips = tf // _LANE

    @pl.when(f_step == 0)
    def _():
        sq_acc[...] = jnp.zeros_like(sq_acc)
        d_acc[...] = jnp.zeros_like(d_acc)

    zero = jnp.zeros((tb, _LANE), jnp.float32)

    def run_strips(n):
        def strip(j, carry):
            sq, ds = carry
            off = pl.multiple_of(j * _LANE, _LANE)
            xs = x_ref[:, pl.ds(off, _LANE)].astype(jnp.float32)
            ys = y_ref[:, pl.ds(off, _LANE)].astype(jnp.float32)
            d = xs - ys
            return (sq + d * d, ds + d)
        return lax.fori_loop(0, n, strip, (zero, zero),
                             unroll=min(8, max(n, 1)))

    # Last-tile geometry (compile-time Python ints).
    last_base = (kf - 1) * tf
    last_full = (fr - last_base) // _LANE          # full strips in last tile
    tail_valid = (fr - last_base) - last_full * _LANE
    ragged = (last_full != nstrips) or (tail_valid > 0)

    if not ragged:
        sq, ds = run_strips(nstrips)
        sq_acc[...] += sq
        d_acc[...] += ds
    else:
        # Masked / shortened path only on the final feature step.
        @pl.when(f_step != kf - 1)
        def _():
            sq, ds = run_strips(nstrips)
            sq_acc[...] += sq
            d_acc[...] += ds

        @pl.when(f_step == kf - 1)
        def _():
            sq, ds = run_strips(last_full)
            if tail_valid:
                off = last_full * _LANE
                xs = x_ref[:, pl.ds(off, _LANE)].astype(jnp.float32)
                ys = y_ref[:, pl.ds(off, _LANE)].astype(jnp.float32)
                lane = lax.broadcasted_iota(jnp.int32, (tb, _LANE), 1)
                d = jnp.where(lane < tail_valid, xs - ys, 0.0)
                sq = sq + d * d
                ds = ds + d
            sq_acc[...] += sq
            d_acc[...] += ds

    @pl.when(f_step == kf - 1)
    def _():
        sq_out[...] = jnp.sum(sq_acc[...], axis=1, keepdims=True)
        d_out[...] = jnp.sum(d_acc[...], axis=1, keepdims=True)


# --------------------------------------------------------------------------
# Wrapper: pick tiling, launch pallas_call.
# --------------------------------------------------------------------------
def _pallas_reductions(xf, yf, force_block_bytes=None):
    R, Fr = xf.shape
    itemsize = max(xf.dtype.itemsize, yf.dtype.itemsize)
    pack = max(8, 32 // min(xf.dtype.itemsize, yf.dtype.itemsize))  # 8 f32, 16 bf16
    block_bytes, vmem_limit, prefer_split = _budgets(force_block_bytes)
    padded_f = _cdiv(Fr, _LANE) * _LANE
    out_row = jax.ShapeDtypeStruct((R, 1), jnp.float32)

    tb_min = R if R < pack else pack

    if tb_min * padded_f * itemsize <= block_bytes:
        # ---- single feature step: grow the batch tile toward the budget ----
        tf = padded_f
        if R <= pack:
            tb = R
        else:
            tb_cap = (block_bytes // (tf * itemsize)) // pack * pack
            tb = max(pack, min(tb_cap, (R // pack) * pack))
            if prefer_split and R >= 2 * pack:
                # v7x: keep >= 2 batch blocks so both TensorCores get work.
                tb = min(tb, max(pack, _cdiv(_cdiv(R, 2), pack) * pack))
        rc = min(pack, tb)                     # rows per register-carry chunk
        nb = _cdiv(R, tb)
        full_strips = Fr // _LANE
        tail_valid = Fr - full_strips * _LANE
        kernel = functools.partial(_reduce_single_kernel, rc=rc,
                                   full_strips=full_strips,
                                   tail_valid=tail_valid)
        row_spec = pl.BlockSpec((tb, 1), lambda b: (b, 0))
        sq_rows, d_rows = pl.pallas_call(
            kernel,
            out_shape=(out_row, out_row),
            grid_spec=pltpu.PrefetchScalarGridSpec(
                num_scalar_prefetch=0,
                grid=(nb,),
                in_specs=[pl.BlockSpec((tb, tf), lambda b: (b, 0)),
                          pl.BlockSpec((tb, tf), lambda b: (b, 0))],
                out_specs=(row_spec, row_spec),
            ),
            compiler_params=pltpu.CompilerParams(
                dimension_semantics=("parallel",),
                vmem_limit_bytes=vmem_limit),
        )(xf, yf)
    else:
        # ---- large F: stream feature tiles, accumulate in VMEM scratch ----
        tb = tb_min
        tf = max(_LANE, (block_bytes // (tb * itemsize)) // _LANE * _LANE)
        tf = min(tf, padded_f)
        kf = _cdiv(Fr, tf)
        nb = _cdiv(R, tb)
        # TODO(synk): on v7x with nb == 1 a 2-way "parallel" feature split
        # would engage the second TensorCore; not implemented.
        kernel = functools.partial(_reduce_multi_kernel, fr=Fr, tf=tf, kf=kf)
        row_spec = pl.BlockSpec((tb, 1), lambda b, f: (b, 0))
        sq_rows, d_rows = pl.pallas_call(
            kernel,
            out_shape=(out_row, out_row),
            grid_spec=pltpu.PrefetchScalarGridSpec(
                num_scalar_prefetch=0,
                grid=(nb, kf),
                in_specs=[pl.BlockSpec((tb, tf), lambda b, f: (b, f)),
                          pl.BlockSpec((tb, tf), lambda b, f: (b, f))],
                out_specs=(row_spec, row_spec),
                scratch_shapes=[pltpu.VMEM((tb, _LANE), jnp.float32),
                                pltpu.VMEM((tb, _LANE), jnp.float32)],
            ),
            compiler_params=pltpu.CompilerParams(
                dimension_semantics=("parallel", "arbitrary"),
                vmem_limit_bytes=vmem_limit),
        )(xf, yf)
    return sq_rows[:, 0], d_rows[:, 0]


def mse_lipchitz_loss(x, y, perm_key, lipchitz_factor=0.3,
                      lipchitz_reduction='mean', mse_reduction='mean',
                      _force_block_bytes=None):
    assert mse_reduction in ('mean', 'sum')
    assert lipchitz_reduction in ('mean', 'sum')
    # TODO(synk): reduction='none' (per-element MSE / un-reduced Lipchitz) is
    # not implemented in-kernel.
    B = x.shape[0]
    F = int(np.prod(x.shape[1:]))

    # Pack small batches onto sublanes: (B, F) -> (B*p, F/p) with a single
    # reshape in native dtype (no padding). p targets the dtype's sublane
    # pack (8 rows f32 / 16 rows bf16) so vregs are full.
    pack = max(8, 32 // min(x.dtype.itemsize, y.dtype.itemsize))
    if B < pack:
        p = next((q for q in (16, 8, 4, 2) if q <= pack and F % q == 0), 1)
    else:
        p = 1
    R, Fr = B * p, F // p
    xf = jnp.reshape(x, (R, Fr))
    yf = jnp.reshape(y, (R, Fr))

    sq_rows, d_rows = _pallas_reductions(xf, yf, _force_block_bytes)

    sqsum = jnp.sum(sq_rows)
    dsum = jnp.sum(jnp.reshape(d_rows, (B, p)), axis=1)   # per-sample sum(x-y)

    # ---- MSE term ----
    mse = sqsum / (B * F) if mse_reduction == 'mean' else sqsum

    # ---- Lipchitz term: depends only on reduce(x) - reduce(y) ----
    dr = dsum / F if lipchitz_reduction == 'mean' else dsum
    # torch.diff(v, dim=0, append=v[0:1])  ->  roll(v, -1) - v
    fd = jnp.roll(dr, -1) - dr
    # torch.diff(v[perm], dim=0, append=v[perm][-1:]) -> last diff is 0
    perm = jax.random.permutation(perm_key, B)
    dp = dr[perm]
    bd = jnp.concatenate([dp[1:], dp[-1:]]) - dp
    lip = jnp.mean((fd - bd) ** 2)

    return (1.0 - lipchitz_factor) * mse + lipchitz_factor * lip


def _reference(x, y, perm_key, lipchitz_factor=0.3):
    # Pure-JAX reference mirroring the PyTorch module (mean/mean reductions),
    # using the same permutation key. Upcast so the comparison is f32-vs-f32.
    x = x.astype(jnp.float32)
    y = y.astype(jnp.float32)
    B = x.shape[0]
    mse = jnp.mean((x - y) ** 2)
    xr = jnp.mean(x.reshape(B, -1), axis=1)
    yr = jnp.mean(y.reshape(B, -1), axis=1)
    fx = jnp.roll(xr, -1) - xr
    fy = jnp.roll(yr, -1) - yr
    perm = jax.random.permutation(perm_key, B)
    xp, yp = xr[perm], yr[perm]
    bx = jnp.concatenate([xp[1:], xp[-1:]]) - xp
    by = jnp.concatenate([yp[1:], yp[-1:]]) - yp
    lip = jnp.mean((fx - bx - (fy - by)) ** 2)
    return (1.0 - lipchitz_factor) * mse + lipchitz_factor * lip


if __name__ == "__main__":
    key = jax.random.PRNGKey(0)
    ks = jax.random.split(key, 12)

    # Case 1: NCHW f32 (B=2, F=1024). Sublane packing -> (16, 128), single
    # feature step, lane-aligned, grid on the "parallel" batch axis.
    x = jax.random.normal(ks[0], (2, 4, 16, 16), dtype=jnp.float32)
    y = jax.random.normal(ks[1], (2, 4, 16, 16), dtype=jnp.float32)
    loss = jax.block_until_ready(mse_lipchitz_loss(x, y, ks[2]))
    ref = jax.block_until_ready(_reference(x, y, ks[2]))
    np.testing.assert_allclose(np.asarray(loss), np.asarray(ref),
                               rtol=1e-5, atol=1e-5)

    # Case 2: bf16 with ragged feature count (F=300 -> packed (16, 75)).
    # Exercises the native-dtype path, the 16-row sublane pack, and the
    # masked tail strip (no full strips at all).
    xb = jax.random.normal(ks[3], (4, 3, 10, 10), dtype=jnp.bfloat16)
    yb = jax.random.normal(ks[4], (4, 3, 10, 10), dtype=jnp.bfloat16)
    loss_b = jax.block_until_ready(mse_lipchitz_loss(xb, yb, ks[5]))
    ref_b = jax.block_until_ready(_reference(xb, yb, ks[5]))
    np.testing.assert_allclose(np.asarray(loss_b), np.asarray(ref_b),
                               rtol=1e-5, atol=1e-5)

    # Case 3: R=12 rows (batch-tail block with dropped OOB output rows) and
    # F=867 (lane-ragged tail strip), f32, single feature step.
    xc = jax.random.normal(ks[6], (12, 867), dtype=jnp.float32)
    yc = jax.random.normal(ks[7], (12, 867), dtype=jnp.float32)
    loss_c = jax.block_until_ready(mse_lipchitz_loss(xc, yc, ks[8]))
    ref_c = jax.block_until_ready(_reference(xc, yc, ks[8]))
    np.testing.assert_allclose(np.asarray(loss_c), np.asarray(ref_c),
                               rtol=1e-5, atol=1e-5)

    # Case 4: force the multi-feature-step (VMEM-scratch) kernel at a small
    # shape via the testing hook; last tile is shortened + lane-masked.
    xd = jax.random.normal(ks[9], (8, 6444), dtype=jnp.float32)
    yd = jax.random.normal(ks[10], (8, 6444), dtype=jnp.float32)
    loss_d = jax.block_until_ready(
        mse_lipchitz_loss(xd, yd, ks[11], _force_block_bytes=32 * 1024))
    ref_d = jax.block_until_ready(_reference(xd, yd, ks[11]))
    np.testing.assert_allclose(np.asarray(loss_d), np.asarray(ref_d),
                               rtol=1e-5, atol=1e-5)

    print("KERNEL_OK")
</pallas_src>

<mosaic_0001>
module attributes {stable_mosaic.version = 11 : i64} {
  func.func @_reduce_single_kernel(%arg0: i32, %arg1: memref<8x128xf32, #tpu.memory_space<vmem>>, %arg2: memref<8x128xf32, #tpu.memory_space<vmem>>, %arg3: memref<8x1xf32, #tpu.memory_space<vmem>>, %arg4: memref<8x1xf32, #tpu.memory_space<vmem>>) attributes {dimension_semantics = [#tpu.dimension_semantics<parallel>], iteration_bounds = array<i64: 2>, scalar_prefetch = 0 : i64, scratch_operands = 0 : i64, tpu.core_type = #tpu.core_type<tc>, window_params = [{transform_indices = @transform_0, window_bounds = array<i64: 8, 128>}, {transform_indices = @transform_1, window_bounds = array<i64: 8, 128>}, {transform_indices = @transform_2, window_bounds = array<i64: 8, 1>}, {transform_indices = @transform_3, window_bounds = array<i64: 8, 1>}]} {
    %cst = arith.constant 0.000000e+00 : f32
    %0 = vector.broadcast %cst : f32 to vector<8x128xf32>
    %c0_i32 = arith.constant 0 : i32
    %c128_i32 = arith.constant 128 : i32
    %1 = arith.muli %c0_i32, %c128_i32 : i32
    %2 = tpu.assume_multiple %1, 128 : i32
    %c0 = arith.constant 0 : index
    %3 = arith.index_cast %2 : i32 to index
    %4 = vector.load %arg1[%c0, %3] : memref<8x128xf32, #tpu.memory_space<vmem>>, vector<8x128xf32>
    %c0_0 = arith.constant 0 : index
    %5 = arith.index_cast %2 : i32 to index
    %6 = vector.load %arg2[%c0_0, %5] : memref<8x128xf32, #tpu.memory_space<vmem>>, vector<8x128xf32>
    %7 = arith.subf %4, %6 : vector<8x128xf32>
    %8 = arith.mulf %7, %7 : vector<8x128xf32>
    %9 = arith.addf %0, %8 : vector<8x128xf32>
    %10 = arith.addf %0, %7 : vector<8x128xf32>
    %c1_i32 = arith.constant 1 : i32
    %cst_1 = arith.constant dense<0.000000e+00> : vector<8xf32>
    %11 = vector.multi_reduction <add>, %9, %cst_1 [1] : vector<8x128xf32> to vector<8xf32>
    %12 = vector.shape_cast %11 : vector<8xf32> to vector<8x1xf32>
    %c0_2 = arith.constant 0 : index
    %c0_3 = arith.constant 0 : index
    %13 = vector.load %arg3[%c0_2, %c0_3] : memref<8x1xf32, #tpu.memory_space<vmem>>, vector<8x1xf32>
    tpu.vector_store %arg3[%c0_2, %c0_3], %12 {strides = array<i32>} : memref<8x1xf32, #tpu.memory_space<vmem>>, vector<8x1xf32>,
    %cst_4 = arith.constant dense<0.000000e+00> : vector<8xf32>
    %14 = vector.multi_reduction <add>, %10, %cst_4 [1] : vector<8x128xf32> to vector<8xf32>
    %15 = vector.shape_cast %14 : vector<8xf32> to vector<8x1xf32>
    %c0_5 = arith.constant 0 : index
    %c0_6 = arith.constant 0 : index
    %16 = vector.load %arg4[%c0_5, %c0_6] : memref<8x1xf32, #tpu.memory_space<vmem>>, vector<8x1xf32>
    tpu.vector_store %arg4[%c0_5, %c0_6], %15 {strides = array<i32>} : memref<8x1xf32, #tpu.memory_space<vmem>>, vector<8x1xf32>,
    return
  }
  func.func @transform_0(%arg0: i32) -> (i32, i32) {
    %c0_i32 = arith.constant 0 : i32
    %c0_i32_0 = arith.constant 0 : i32
    return %arg0, %c0_i32 : i32, i32
  }
  func.func @transform_1(%arg0: i32) -> (i32, i32) {
    %c0_i32 = arith.constant 0 : i32
    %c0_i32_0 = arith.constant 0 : i32
    return %arg0, %c0_i32 : i32, i32
  }
  func.func @transform_2(%arg0: i32) -> (i32, i32) {
    %c0_i32 = arith.constant 0 : i32
    %c0_i32_0 = arith.constant 0 : i32
    return %arg0, %c0_i32 : i32, i32
  }
  func.func @transform_3(%arg0: i32) -> (i32, i32) {
    %c0_i32 = arith.constant 0 : i32
    %c0_i32_0 = arith.constant 0 : i32
    return %arg0, %c0_i32 : i32, i32
  }
}

</mosaic_0001>

<llo_original>
// kernel: tpu_custom_call.1
$region0: #{tpu_custom_call.1}
  #allocation0 [shape = 'u32[]', space=smem, size = 0x4, offset = 0x4, fixed_abs, tag = 'smem constant byte address 0x4 - core index']
  #allocation1 [shape = 'u32[144,128]{1,0:T(1,128)}', space=vmem, size = 0x12000, scoped, tag = 'internal scratch']
  %s0 = inlined_call_operand.hbm [shape: f32[16,128], index: 0, kind: input, shape index: {}]
  %s1 = inlined_call_operand.hbm [shape: f32[16,128], index: 1, kind: input, shape index: {}]
  %s2 = inlined_call_operand.vmem [shape: f32[16,1], index: 2, kind: output, shape index: {0}]
  %s3 = inlined_call_operand.vmem [shape: f32[16,1], index: 3, kind: output, shape index: {1}]
  %4 = xla_tuple %s2, %s3
  %s5 = sld [smem:[#allocation0]]
  $region57: #{tpu_custom_call.1} parent=0
    _
  %s7 = ssub.s32 1, %s5
  %s8 = scalar_select 0, %s7, %s5
  $region1: #{tpu_custom_call.1} parent=0
    #allocation2 [shape = 'u8[8192]{0}', space=vmem, size = 0x2000, scoped, tag = 'input window, operand 0']
    #allocation3 [shape = 's32[2]{0}', space=sflag, size = 0x8, scoped, tag = 'scoped memory for tpu_custom_call.1']
    #allocation4 [shape = 'u8[8192]{0}', space=vmem, size = 0x2000, scoped, tag = 'input window, operand 1']
    #allocation5 [shape = 's32[2]{0}', space=sflag, size = 0x8, scoped, tag = 'scoped memory for tpu_custom_call.1']
    %9 = vsyncpa [#allocation3], 0
    %s10 = scalar_lea.sflag [#allocation3], 1
    %11 = vsyncpa %s10, 0
    %12 = vsyncpa [#allocation5], 0
    %s13 = scalar_lea.sflag [#allocation5], 1
    %14 = vsyncpa %s13, 0
    loop: start=0, step=1, limit=4
    $region2: #{tpu_custom_call.1} parent=1 // loop_pre_header
      _
    $region3: #{tpu_custom_call.1} parent=1 // loop_header
      %s16 = sphi 0, %s20
      %p17 = scmp.ge.s32.totalorder %s16, 4
      %s26 = sphi 0, %s28
      %s29 = sphi 0, %s26
      %s30 = sphi 0, %s29
      %s46 = sphi 0, %s30
      %s52 = sphi 0, %s54
      %s55 = sphi 0, %s52
      %s56 = sphi 0, %s55
      %s72 = sphi 0, %s56
      %s78 = sphi 0, %s80
      %s81 = sphi 0, %s78
      %s82 = sphi 0, %s81
      %s98 = sphi 0, %s82
      %s104 = sphi 0, %s106
      %s107 = sphi 0, %s104
      %s108 = sphi 0, %s107
      %s124 = sphi 0, %s108
    $region4: #{tpu_custom_call.1} parent=1 // loop_header_branch
      %19 = sbr.rel (%p17) target = $region8
    $region5: #{tpu_custom_call.1} parent=1 // loop_body
      %s21 = ssub.s32 %s16, 1
      %s22 = ssub.s32 %s16, 2
      %s23 = sadd.s32 %s16, 1
      %s24 = ssub.s32 %s16, %s23
      %p25 = scmp.eq.s32.totalorder %s24, 0
      %s27 = sadd.s32 %s26, 1
      %s28 = scalar_select %p25, %s26, %s27
      %p31 = pneg %p25
      %p32 = scmp.eq.s32.totalorder %s16, 1
      %p33 = por %p31, %p32
      %p34 = scmp.ne.s32.totalorder %s26, %s29
      %p35 = scmp.eq.s32.totalorder %s16, 0
      %p36 = por %p34, %p35
      %p37 = scmp.ne.s32.totalorder %s26, %s29
      %p38 = scmp.eq.s32.totalorder %s21, 1
      %p39 = por %p37, %p38
      %p40 = scmp.ne.s32.totalorder %s29, %s30
      %p41 = scmp.eq.s32.totalorder %s21, 0
      %p42 = por %p40, %p41
      %p43 = scmp.ne.s32.totalorder %s29, %s30
      %p44 = scmp.eq.s32.totalorder %s22, 1
      %p45 = por %p43, %p44
      %p47 = scmp.ne.s32.totalorder %s30, %s46
      %p48 = scmp.eq.s32.totalorder %s22, 0
      %p49 = por %p47, %p48
      %s50 = ssub.s32 %s16, %s23
      %p51 = scmp.eq.s32.totalorder %s50, 0
      %s53 = sadd.s32 %s52, 1
      %s54 = scalar_select %p51, %s52, %s53
      %p57 = pneg %p51
      %p58 = scmp.eq.s32.totalorder %s16, 1
      %p59 = por %p57, %p58
      %p60 = scmp.ne.s32.totalorder %s52, %s55
      %p61 = scmp.eq.s32.totalorder %s16, 0
      %p62 = por %p60, %p61
      %p63 = scmp.ne.s32.totalorder %s52, %s55
      %p64 = scmp.eq.s32.totalorder %s21, 1
      %p65 = por %p63, %p64
      %p66 = scmp.ne.s32.totalorder %s55, %s56
      %p67 = scmp.eq.s32.totalorder %s21, 0
      %p68 = por %p66, %p67
      %p69 = scmp.ne.s32.totalorder %s55, %s56
      %p70 = scmp.eq.s32.totalorder %s22, 1
      %p71 = por %p69, %p70
      %p73 = scmp.ne.s32.totalorder %s56, %s72
      %p74 = scmp.eq.s32.totalorder %s22, 0
      %p75 = por %p73, %p74
      %s76 = ssub.s32 %s16, %s23
      %p77 = scmp.eq.s32.totalorder %s76, 0
      %s79 = sadd.s32 %s78, 1
      %s80 = scalar_select %p77, %s78, %s79
      %p83 = pneg %p77
      %p84 = scmp.eq.s32.totalorder %s16, 1
      %p85 = por %p83, %p84
      %p86 = scmp.ne.s32.totalorder %s78, %s81
      %p87 = scmp.eq.s32.totalorder %s16, 0
      %p88 = por %p86, %p87
      %p89 = scmp.ne.s32.totalorder %s78, %s81
      %p90 = scmp.eq.s32.totalorder %s21, 1
      %p91 = por %p89, %p90
      %p92 = scmp.ne.s32.totalorder %s81, %s82
      %p93 = scmp.eq.s32.totalorder %s21, 0
      %p94 = por %p92, %p93
      %p95 = scmp.ne.s32.totalorder %s81, %s82
      %p96 = scmp.eq.s32.totalorder %s22, 1
      %p97 = por %p95, %p96
      %p99 = scmp.ne.s32.totalorder %s82, %s98
      %p100 = scmp.eq.s32.totalorder %s22, 0
      %p101 = por %p99, %p100
      %s102 = ssub.s32 %s16, %s23
      %p103 = scmp.eq.s32.totalorder %s102, 0
      %s105 = sadd.s32 %s104, 1
      %s106 = scalar_select %p103, %s104, %s105
      %p109 = pneg %p103
      %p110 = scmp.eq.s32.totalorder %s16, 1
      %p111 = por %p109, %p110
      %p112 = scmp.ne.s32.totalorder %s104, %s107
      %p113 = scmp.eq.s32.totalorder %s16, 0
      %p114 = por %p112, %p113
      %p115 = scmp.ne.s32.totalorder %s104, %s107
      %p116 = scmp.eq.s32.totalorder %s21, 1
      %p117 = por %p115, %p116
      %p118 = scmp.ne.s32.totalorder %s107, %s108
      %p119 = scmp.eq.s32.totalorder %s21, 0
      %p120 = por %p118, %p119
      %p121 = scmp.ne.s32.totalorder %s107, %s108
      %p122 = scmp.eq.s32.totalorder %s22, 1
      %p123 = por %p121, %p122
      %p125 = scmp.ne.s32.totalorder %s108, %s124
      %p126 = scmp.eq.s32.totalorder %s22, 0
      %p127 = por %p125, %p126
      %p128 = scmp.le.s32.totalorder 1, %s16
      %p129 = scmp.lt.s32.totalorder %s16, 3
      %p130 = pnand %p128, %p129
      %p131 = pneg %p130
      // Predicated region
      $region9: #{tpu_custom_call.1} parent=5 // pred_check
        _
      $region10: #{tpu_custom_call.1} parent=5 // pred_check_branch
        %133 = sbr.rel (%p130) target = $region12
      $region11: #{tpu_custom_call.1} parent=5 // pred_region
        %s134 = ssub.s32 %s16, 1
      $region12: #{tpu_custom_call.1} parent=5 // pred_fallthru
        _
      %p135 = scmp.lt.s32.totalorder %s16, 2
      // Predicated region
      $region13: #{tpu_custom_call.1} parent=5 // pred_check
        %p136 = pneg %p135
      $region14: #{tpu_custom_call.1} parent=5 // pred_check_branch
        %138 = sbr.rel (%p136) target = $region16
      $region15: #{tpu_custom_call.1} parent=5 // pred_region
        // Predicated region
        $region17: #{tpu_custom_call.1} parent=15 // pred_check
          %p139 = pneg %p36
        $region18: #{tpu_custom_call.1} parent=15 // pred_check_branch
          %141 = sbr.rel (%p139) target = $region20
        $region19: #{tpu_custom_call.1} parent=15 // pred_region
          %s142 = sand.u32 %s26, 1
          %s143 = scalar_lea.sflag [#allocation3], %s142
          %s144 = sand.u32 %s26, 1
          %s145 = smul.addr %s144, 8
          %s146 = scalar_lea.vmem [#allocation2], %s145
          %s148 = ssub.s32 128, 128
          %149 = vsyncadd %s143, %s148
          %s150 = smul.addr %s16, 128
          %s151 = scalar_lea.hbm %s0, %s150
          %s153 = sshll.u32 %s146, 4
          %s154 = int_to_ptr.vmem [resolvable:$true] %s153
          %156 = dma.hbm_to_vmem [thread:$0]  %s151, 128, %s154, %s143
        $region20: #{tpu_custom_call.1} parent=15 // pred_fallthru
          _
        // Predicated region
        $region21: #{tpu_custom_call.1} parent=15 // pred_check
          %p157 = pneg %p62
        $region22: #{tpu_custom_call.1} parent=15 // pred_check_branch
          %159 = sbr.rel (%p157) target = $region24
        $region23: #{tpu_custom_call.1} parent=15 // pred_region
          %s160 = sand.u32 %s52, 1
          %s161 = scalar_lea.sflag [#allocation5], %s160
          %s162 = sand.u32 %s52, 1
          %s163 = smul.addr %s162, 8
          %s164 = scalar_lea.vmem [#allocation4], %s163
          %s166 = ssub.s32 128, 128
          %167 = vsyncadd %s161, %s166
          %s168 = smul.addr %s16, 128
          %s169 = scalar_lea.hbm %s1, %s168
          %s171 = sshll.u32 %s164, 4
          %s172 = int_to_ptr.vmem [resolvable:$true] %s171
          %174 = dma.hbm_to_vmem [thread:$0]  %s169, 128, %s172, %s161
        $region24: #{tpu_custom_call.1} parent=15 // pred_fallthru
          _
      $region16: #{tpu_custom_call.1} parent=5 // pred_fallthru
        _
      %p175 = scmp.le.s32.totalorder 1, %s16
      %p176 = scmp.lt.s32.totalorder %s16, 3
      %p177 = pnand %p175, %p176
      %p178 = pneg %p177
      // Predicated region
      $region25: #{tpu_custom_call.1} parent=5 // pred_check
        _
      $region26: #{tpu_custom_call.1} parent=5 // pred_check_branch
        %180 = sbr.rel (%p177) target = $region28
      $region27: #{tpu_custom_call.1} parent=5 // pred_region
        %s181 = ssub.s32 %s16, 1
        %s182 = sand.u32 %s29, 1
        %s183 = scalar_lea.sflag [#allocation3], %s182
        %s184 = sand.u32 %s29, 1
        %s185 = smul.addr %s184, 8
        %s186 = scalar_lea.vmem [#allocation2], %s185
        // Predicated region
        $region29: #{tpu_custom_call.1} parent=27 // pred_check
          %p187 = pneg %p42
        $region30: #{tpu_custom_call.1} parent=27 // pred_check_branch
          %189 = sbr.rel (%p187) target = $region32
        $region31: #{tpu_custom_call.1} parent=27 // pred_region
          %190 = dma.done %s183, 128
        $region32: #{tpu_custom_call.1} parent=27 // pred_fallthru
          _
        %s191 = sand.u32 %s55, 1
        %s192 = scalar_lea.sflag [#allocation5], %s191
        %s193 = sand.u32 %s55, 1
        %s194 = smul.addr %s193, 8
        %s195 = scalar_lea.vmem [#allocation4], %s194
        // Predicated region
        $region33: #{tpu_custom_call.1} parent=27 // pred_check
          %p196 = pneg %p68
        $region34: #{tpu_custom_call.1} parent=27 // pred_check_branch
          %198 = sbr.rel (%p196) target = $region36
        $region35: #{tpu_custom_call.1} parent=27 // pred_region
          %199 = dma.done %s192, 128
        $region36: #{tpu_custom_call.1} parent=27 // pred_fallthru
          _
        %s200 = sand.u32 %s29, 1
        %s201 = scalar_lea.sflag [#allocation3], %s200
        %s202 = sand.u32 %s29, 1
        %s203 = smul.addr %s202, 8
        %s204 = scalar_lea.vmem [#allocation2], %s203
        %p205 = pneg %p42
        %p206 = pneg %p39
        %s207 = sand.u32 %s55, 1
        %s208 = scalar_lea.sflag [#allocation5], %s207
        %s209 = sand.u32 %s55, 1
        %s210 = smul.addr %s209, 8
        %s211 = scalar_lea.vmem [#allocation4], %s210
        %p212 = pneg %p68
        %p213 = pneg %p65
        %p214 = pneg %p94
        %p215 = pneg %p91
        %p216 = scmp.lt.s32.totalorder %s21, 1
        %s217 = scalar_select %p216, %s21, 1
        %s218 = smul.addr %s217, 8
        %s219 = scalar_lea.vmem %s2, %s218
        %p220 = pneg %p120
        %p221 = pneg %p117
        %p222 = scmp.lt.s32.totalorder %s21, 1
        %s223 = scalar_select %p222, %s21, 1
        %s224 = smul.addr %s223, 8
        %s225 = scalar_lea.vmem %s3, %s224
        %p226 = scmp.lt.s32.totalorder %s21, 1
        %s227 = scalar_select %p226, %s21, 1
        %s228 = smul.addr %s227, 8
        %s229 = scalar_lea.vmem %s2, %s228
        %p230 = scmp.lt.s32.totalorder %s21, 1
        %s231 = scalar_select %p230, %s21, 1
        %s232 = smul.addr %s231, 8
        %s233 = scalar_lea.vmem %s3, %s232
        %v234 = vld [vmem:[%s186] sm:$0xff]
        %v235 = vld [vmem:[%s195] sm:$0xff]
        %v236 = vsub.f32 %v234, %v235
        %v237 = vmul.f32 %v236, %v236
        %v238 = vadd.f32 %v237, 0.0
        %v239 = vadd.f32 %v236, 0.0
        %240 = vadd.xlane.f32.xlu0 %v238
        %v241 = vpop.xlane.xlu0 %240
        %vm242 = vcmask 7168
        %243 = vst.msk [vmem:[%s229] sm:$0xff] %vm242, %v241
        %244 = vadd.xlane.f32.xlu0 %v239
        %v245 = vpop.xlane.xlu0 %244
        %246 = vst.msk [vmem:[%s233] sm:$0xff] %vm242, %v245
        %p247 = scmp.lt.s32.totalorder %s21, 1
        %s248 = scalar_select %p247, %s21, 1
        %s249 = smul.addr %s248, 8
        %s250 = scalar_lea.vmem %s2, %s249
        %p251 = scmp.lt.s32.totalorder %s21, 1
        %s252 = scalar_select %p251, %s21, 1
        %s253 = smul.addr %s252, 8
        %s254 = scalar_lea.vmem %s3, %s253
        // Predicated region
        $region37: #{tpu_custom_call.1} parent=27 // pred_check
          %p255 = pneg %p91
        $region38: #{tpu_custom_call.1} parent=27 // pred_check_branch
          %257 = sbr.rel (%p255) target = $region40
        $region39: #{tpu_custom_call.1} parent=27 // pred_region
          _
        $region40: #{tpu_custom_call.1} parent=27 // pred_fallthru
          _
        // Predicated region
        $region41: #{tpu_custom_call.1} parent=27 // pred_check
          %p258 = pneg %p117
        $region42: #{tpu_custom_call.1} parent=27 // pred_check_branch
          %260 = sbr.rel (%p258) target = $region44
        $region43: #{tpu_custom_call.1} parent=27 // pred_region
          _
        $region44: #{tpu_custom_call.1} parent=27 // pred_fallthru
          _
      $region28: #{tpu_custom_call.1} parent=5 // pred_fallthru
        _
      %p261 = scmp.le.s32.totalorder 2, %s16
      // Predicated region
      $region45: #{tpu_custom_call.1} parent=5 // pred_check
        %p262 = pneg %p261
      $region46: #{tpu_custom_call.1} parent=5 // pred_check_branch
        %264 = sbr.rel (%p262) target = $region48
      $region47: #{tpu_custom_call.1} parent=5 // pred_region
        %s265 = ssub.s32 %s16, 2
        // Predicated region
        $region49: #{tpu_custom_call.1} parent=47 // pred_check
          %p266 = pneg %p97
        $region50: #{tpu_custom_call.1} parent=47 // pred_check_branch
          %268 = sbr.rel (%p266) target = $region52
        $region51: #{tpu_custom_call.1} parent=47 // pred_region
          %p269 = scmp.lt.s32.totalorder %s22, 1
          %s270 = scalar_select %p269, %s22, 1
          %s271 = smul.addr %s270, 8
          %s272 = scalar_lea.vmem %s2, %s271
        $region52: #{tpu_custom_call.1} parent=47 // pred_fallthru
          _
        // Predicated region
        $region53: #{tpu_custom_call.1} parent=47 // pred_check
          %p273 = pneg %p123
        $region54: #{tpu_custom_call.1} parent=47 // pred_check_branch
          %275 = sbr.rel (%p273) target = $region56
        $region55: #{tpu_custom_call.1} parent=47 // pred_region
          %p276 = scmp.lt.s32.totalorder %s22, 1
          %s277 = scalar_select %p276, %s22, 1
          %s278 = smul.addr %s277, 8
          %s279 = scalar_lea.vmem %s3, %s278
        $region56: #{tpu_custom_call.1} parent=47 // pred_fallthru
          _
      $region48: #{tpu_custom_call.1} parent=5 // pred_fallthru
        _
    $region6: #{tpu_custom_call.1} parent=1 // loop_footer
      %s20 = sadd.s32 1, %s16
    $region7: #{tpu_custom_call.1} parent=1 // loop_footer_branch
      %15 = sbr.rel target = $region3
    $region8: #{tpu_custom_call.1} parent=1 // loop_exit
      _
    %280 = vsyncpa [#allocation3], 1
    %s281 = scalar_lea.sflag [#allocation3], 1
    %282 = vsyncpa %s281, 1
    %283 = vsyncpa [#allocation5], 1
    %s284 = scalar_lea.sflag [#allocation5], 1
    %285 = vsyncpa %s284, 1

</llo_original>
